<compile_context>
chip_gen: v7x
topology: tpu7x:2x2x1
jax: 0.10.0
libtpu: 0.0.40
codegen_flags: <defaults>
</compile_context>

<pallas_src>
import jax
import jax.numpy as jnp
from jax.experimental import pallas as pl
from jax.experimental.pallas import tpu as pltpu


_TB_CAP = 512      # batch-tile cap (rows)
_TN_CAP = 2048     # class-strip cap (lanes)
_VMEM_LIMIT = 32 * 1024 * 1024


def _round_up(x, m):
    return ((x + m - 1) // m) * m


def _pick_tile(total, unit, cap):
    """Largest multiple of `unit` that divides `total` and is <= cap."""
    best = unit
    n = total // unit
    for d in range(1, n + 1):
        if n % d == 0 and d * unit <= cap:
            best = d * unit
    return best


# ----------------------------------------------------------------------------
# Kernels
# ----------------------------------------------------------------------------
def _fused_mlp_kernel(x_ref, w1_ref, b1_ref, w2_ref, b2_ref, o_ref):
    # Whole problem in one grid step: cast x to bf16 in-kernel, fc1 + ReLU in
    # f32, fc2 with bf16 operands / f32 accumulation.
    x = x_ref[...].astype(jnp.bfloat16)
    h = jnp.dot(x, w1_ref[...], preferred_element_type=jnp.float32)
    h = jnp.maximum(h + b1_ref[...], 0.0)
    out = jnp.dot(h.astype(jnp.bfloat16), w2_ref[...],
                  preferred_element_type=jnp.float32)
    o_ref[...] = (out + b2_ref[...]).astype(o_ref.dtype)


def _fc1_kernel(x_ref, w1_ref, b1_ref, h_ref):
    x = x_ref[...].astype(jnp.bfloat16)
    h = jnp.dot(x, w1_ref[...], preferred_element_type=jnp.float32)
    h_ref[...] = jnp.maximum(h + b1_ref[...], 0.0).astype(h_ref.dtype)


def _fc2_kernel(h_ref, w2_ref, b2_ref, o_ref):
    out = jnp.dot(h_ref[...], w2_ref[...], preferred_element_type=jnp.float32)
    o_ref[...] = (out + b2_ref[...]).astype(o_ref.dtype)


# ----------------------------------------------------------------------------
# Parameter preparation (one-time) and forward wrapper (per-call)
# ----------------------------------------------------------------------------
def prepare_params(w1, b1, w2, b2):
    """One-time: pad num_classes to a lane multiple and cast MXU weights to
    bf16 so the per-call path does no extra HBM passes over the weights."""
    F, H = w1.shape
    C = w2.shape[1]
    assert b1.shape == (1, H) and w2.shape[0] == H and b2.shape == (1, C)
    C_pad = _round_up(max(C, 128), 128)
    if C_pad != C:
        # Zero-filled padded columns -> padded logits are exactly 0 and are
        # sliced off in arcface_forward.
        w2 = jnp.pad(w2, ((0, 0), (0, C_pad - C)))
        b2 = jnp.pad(b2, ((0, 0), (0, C_pad - C)))
    return {
        "w1": w1.astype(jnp.bfloat16),
        "b1": b1.astype(jnp.float32),
        "w2": w2.astype(jnp.bfloat16),
        "b2": b2.astype(jnp.float32),
        "num_classes": C,
    }


def arcface_forward(features, params, *, tb=None, tn=None):
    """features: (B, F) f32.  params: output of prepare_params().
    Returns logits (B, num_classes) f32."""
    w1, b1, w2, b2 = params["w1"], params["b1"], params["w2"], params["b2"]
    C = params["num_classes"]
    B, F = features.shape
    H = w1.shape[1]
    C_pad = w2.shape[1]
    assert w1.shape == (F, H)

    # ---- tile derivation (sized well under v7x's 32 MiB scoped VMEM even
    # with double-buffering; v5e/v6e have more headroom).
    if tb is None:
        tb = min(_TB_CAP, _round_up(B, 8))
    tb = max(8, _round_up(tb, 8))
    B_pad = _round_up(B, tb)

    if tn is None:
        tn = _pick_tile(C_pad, 128, _TN_CAP)
    assert tn % 128 == 0 and C_pad % tn == 0, "tn must divide padded classes"

    nb = B_pad // tb
    nc = C_pad // tn

    x = features
    if B_pad != B:
        x = jnp.pad(x, ((0, B_pad - B), (0, 0)))
    x = x.astype(jnp.float32)   # stays f32 in HBM; cast to bf16 in-kernel

    mlp_flops = 2 * B_pad * F * H + 2 * B_pad * H * C_pad

    if nb == 1 and nc == 1:
        # -------- single-step fast path: whole problem in one grid step ----
        bytes_accessed = (B_pad * F * 4 + F * H * 2 + H * 4 +
                          H * C_pad * 2 + C_pad * 4 + B_pad * C_pad * 4)
        logits = pl.pallas_call(
            _fused_mlp_kernel,
            out_shape=jax.ShapeDtypeStruct((B_pad, C_pad), jnp.float32),
            grid=(1, 1),
            in_specs=[
                pl.BlockSpec((B_pad, F), lambda i, j: (0, 0)),
                pl.BlockSpec((F, H), lambda i, j: (0, 0)),
                pl.BlockSpec((1, H), lambda i, j: (0, 0)),
                pl.BlockSpec((H, C_pad), lambda i, j: (0, 0)),
                pl.BlockSpec((1, C_pad), lambda i, j: (0, 0)),
            ],
            out_specs=pl.BlockSpec((B_pad, C_pad), lambda i, j: (0, 0)),
            compiler_params=pltpu.CompilerParams(
                dimension_semantics=("arbitrary", "arbitrary"),
                vmem_limit_bytes=_VMEM_LIMIT),
            cost_estimate=pl.CostEstimate(
                flops=mlp_flops, transcendentals=0,
                bytes_accessed=bytes_accessed),
        )(x, w1, b1, w2, b2)
        return logits[:B, :C]

    # -------- general path: fc1 (tiny) then fc2 with w2 read once ----------
    fc1_bytes = B_pad * F * 4 + F * H * 2 + H * 4 + B_pad * H * 2
    h = pl.pallas_call(
        _fc1_kernel,
        out_shape=jax.ShapeDtypeStruct((B_pad, H), jnp.bfloat16),
        grid=(nb,),
        in_specs=[
            pl.BlockSpec((tb, F), lambda i: (i, 0)),
            pl.BlockSpec((F, H), lambda i: (0, 0)),
            pl.BlockSpec((1, H), lambda i: (0, 0)),
        ],
        out_specs=pl.BlockSpec((tb, H), lambda i: (i, 0)),
        compiler_params=pltpu.CompilerParams(
            dimension_semantics=("parallel",),
            vmem_limit_bytes=_VMEM_LIMIT),
        cost_estimate=pl.CostEstimate(
            flops=2 * B_pad * F * H, transcendentals=0,
            bytes_accessed=fc1_bytes),
    )(x, w1, b1)

    # Class strips outermost (parallel -> shardable across v7x's 2 TCs),
    # batch tiles innermost: w2's block index (0, j) is constant across the
    # inner axis, so each strip is DMA'd from HBM exactly once per core.
    fc2_bytes = (nc * B_pad * H * 2 + H * C_pad * 2 + C_pad * 4 +
                 B_pad * C_pad * 4)
    logits = pl.pallas_call(
        _fc2_kernel,
        out_shape=jax.ShapeDtypeStruct((B_pad, C_pad), jnp.float32),
        grid=(nc, nb),
        in_specs=[
            pl.BlockSpec((tb, H), lambda j, i: (i, 0)),   # fc1 activations
            pl.BlockSpec((H, tn), lambda j, i: (0, j)),   # w2 column strip
            pl.BlockSpec((1, tn), lambda j, i: (0, j)),   # b2 strip
        ],
        out_specs=pl.BlockSpec((tb, tn), lambda j, i: (i, j)),
        compiler_params=pltpu.CompilerParams(
            dimension_semantics=("parallel", "arbitrary"),
            vmem_limit_bytes=_VMEM_LIMIT),
        cost_estimate=pl.CostEstimate(
            flops=2 * B_pad * H * C_pad, transcendentals=0,
            bytes_accessed=fc2_bytes),
    )(h, w2, b2)

    return logits[:B, :C]


def init_params(key, feature_dim, hidden, num_classes):
    """Deterministic PyTorch-style nn.Linear init: U(+/- 1/sqrt(fan_in))."""
    k1, k2, k3, k4 = jax.random.split(key, 4)
    bound1 = 1.0 / (feature_dim ** 0.5)
    bound2 = 1.0 / (hidden ** 0.5)
    w1 = jax.random.uniform(k1, (feature_dim, hidden), jnp.float32,
                            minval=-bound1, maxval=bound1)
    b1 = jax.random.uniform(k2, (1, hidden), jnp.float32,
                            minval=-bound1, maxval=bound1)
    w2 = jax.random.uniform(k3, (hidden, num_classes), jnp.float32,
                            minval=-bound2, maxval=bound2)
    b2 = jax.random.uniform(k4, (1, num_classes), jnp.float32,
                            minval=-bound2, maxval=bound2)
    return w1, b1, w2, b2


if __name__ == "__main__":
    # buffalo_l ArcFace embeddings are 512-wide, fc1 hidden is fixed at 256.
    B = 16
    FEATURE_DIM = 512
    HIDDEN = 256
    NUM_CLASSES = 300

    key = jax.random.PRNGKey(0)
    kx, kp = jax.random.split(key)
    features = jax.random.normal(kx, (B, FEATURE_DIM), jnp.float32)
    w1, b1, w2, b2 = init_params(kp, FEATURE_DIM, HIDDEN, NUM_CLASSES)
    params = prepare_params(w1, b1, w2, b2)

    # Pure-JAX reference with the same bf16 operand rounding / f32 accumulation.
    xb = features.astype(jnp.bfloat16)
    h_ref = jnp.maximum(
        jnp.dot(xb, w1.astype(jnp.bfloat16),
                preferred_element_type=jnp.float32) + b1, 0.0)
    ref = jnp.dot(h_ref.astype(jnp.bfloat16), w2.astype(jnp.bfloat16),
                  preferred_element_type=jnp.float32) + b2

    # 1) default tiling -> single-step fused fast path (grid (1,1)).
    logits_fast = arcface_forward(features, params)
    jax.block_until_ready(logits_fast)
    assert logits_fast.shape == (B, NUM_CLASSES)
    assert jnp.allclose(logits_fast, ref, atol=2e-2, rtol=2e-2)

    # 2) forced small tiles -> exercises the general fc1 + class-strip fc2 path.
    logits_gen = arcface_forward(features, params, tb=16, tn=128)
    jax.block_until_ready(logits_gen)
    assert logits_gen.shape == (B, NUM_CLASSES)
    assert jnp.allclose(logits_gen, ref, atol=2e-2, rtol=2e-2)

    print("KERNEL_OK")
</pallas_src>

<mosaic_0001>
module attributes {stable_mosaic.version = 11 : i64} {
  func.func @_fused_mlp_kernel(%arg0: i32, %arg1: i32, %arg2: memref<16x512xf32, #tpu.memory_space<vmem>>, %arg3: memref<512x256xbf16, #tpu.memory_space<vmem>>, %arg4: memref<1x256xf32, #tpu.memory_space<vmem>>, %arg5: memref<256x384xbf16, #tpu.memory_space<vmem>>, %arg6: memref<1x384xf32, #tpu.memory_space<vmem>>, %arg7: memref<16x384xf32, #tpu.memory_space<vmem>>) attributes {dimension_semantics = [#tpu.dimension_semantics<arbitrary>, #tpu.dimension_semantics<arbitrary>], iteration_bounds = array<i64: 1, 1>, scalar_prefetch = 0 : i64, scratch_operands = 0 : i64, tpu.core_type = #tpu.core_type<tc>, window_params = [{pipeline_mode = #tpu.pipeline_mode<synchronous>, transform_indices = @transform_0, window_bounds = array<i64: 16, 512>}, {pipeline_mode = #tpu.pipeline_mode<synchronous>, transform_indices = @transform_1, window_bounds = array<i64: 512, 256>}, {pipeline_mode = #tpu.pipeline_mode<synchronous>, transform_indices = @transform_2, window_bounds = array<i64: 1, 256>}, {pipeline_mode = #tpu.pipeline_mode<synchronous>, transform_indices = @transform_3, window_bounds = array<i64: 256, 384>}, {pipeline_mode = #tpu.pipeline_mode<synchronous>, transform_indices = @transform_4, window_bounds = array<i64: 1, 384>}, {pipeline_mode = #tpu.pipeline_mode<synchronous>, transform_indices = @transform_5, window_bounds = array<i64: 16, 384>}]} {
    %c0 = arith.constant 0 : index
    %c0_0 = arith.constant 0 : index
    %0 = vector.load %arg2[%c0, %c0_0] : memref<16x512xf32, #tpu.memory_space<vmem>>, vector<16x512xf32>
    %1 = arith.truncf %0 : vector<16x512xf32> to vector<16x512xbf16>
    %c0_1 = arith.constant 0 : index
    %c0_2 = arith.constant 0 : index
    %2 = vector.load %arg3[%c0_1, %c0_2] : memref<512x256xbf16, #tpu.memory_space<vmem>>, vector<512x256xbf16>
    %cst = arith.constant dense<0.000000e+00> : vector<16x256xf32>
    %3 = tpu.matmul %1, %2, %cst {dimension_numbers = #tpu.dot_dimension_numbers<[1], [0], [0], [1], [0, 0, 1, 1], [], []>} : vector<16x512xbf16>, vector<512x256xbf16>, vector<16x256xf32> -> vector<16x256xf32>
    %c0_3 = arith.constant 0 : index
    %c0_4 = arith.constant 0 : index
    %4 = vector.load %arg4[%c0_3, %c0_4] : memref<1x256xf32, #tpu.memory_space<vmem>>, vector<1x256xf32>
    %5 = vector.broadcast %4 : vector<1x256xf32> to vector<16x256xf32>
    %6 = arith.addf %3, %5 : vector<16x256xf32>
    %cst_5 = arith.constant 0.000000e+00 : f32
    %7 = vector.broadcast %cst_5 : f32 to vector<16x256xf32>
    %8 = arith.maximumf %6, %7 : vector<16x256xf32>
    %9 = arith.truncf %8 : vector<16x256xf32> to vector<16x256xbf16>
    %c0_6 = arith.constant 0 : index
    %c0_7 = arith.constant 0 : index
    %10 = vector.load %arg5[%c0_6, %c0_7] : memref<256x384xbf16, #tpu.memory_space<vmem>>, vector<256x384xbf16>
    %cst_8 = arith.constant dense<0.000000e+00> : vector<16x384xf32>
    %11 = tpu.matmul %9, %10, %cst_8 {dimension_numbers = #tpu.dot_dimension_numbers<[1], [0], [0], [1], [0, 0, 1, 1], [], []>} : vector<16x256xbf16>, vector<256x384xbf16>, vector<16x384xf32> -> vector<16x384xf32>
    %c0_9 = arith.constant 0 : index
    %c0_10 = arith.constant 0 : index
    %12 = vector.load %arg6[%c0_9, %c0_10] : memref<1x384xf32, #tpu.memory_space<vmem>>, vector<1x384xf32>
    %13 = vector.broadcast %12 : vector<1x384xf32> to vector<16x384xf32>
    %14 = arith.addf %11, %13 : vector<16x384xf32>
    %c0_11 = arith.constant 0 : index
    %c0_12 = arith.constant 0 : index
    %15 = vector.load %arg7[%c0_11, %c0_12] : memref<16x384xf32, #tpu.memory_space<vmem>>, vector<16x384xf32>
    tpu.vector_store %arg7[%c0_11, %c0_12], %14 {strides = array<i32>} : memref<16x384xf32, #tpu.memory_space<vmem>>, vector<16x384xf32>,
    return
  }
  func.func @transform_0(%arg0: i32, %arg1: i32) -> (i32, i32) {
    %c0_i32 = arith.constant 0 : i32
    %c0_i32_0 = arith.constant 0 : i32
    %c0_i32_1 = arith.constant 0 : i32
    return %c0_i32, %c0_i32_0 : i32, i32
  }
  func.func @transform_1(%arg0: i32, %arg1: i32) -> (i32, i32) {
    %c0_i32 = arith.constant 0 : i32
    %c0_i32_0 = arith.constant 0 : i32
    %c0_i32_1 = arith.constant 0 : i32
    return %c0_i32, %c0_i32_0 : i32, i32
  }
  func.func @transform_2(%arg0: i32, %arg1: i32) -> (i32, i32) {
    %c0_i32 = arith.constant 0 : i32
    %c0_i32_0 = arith.constant 0 : i32
    %c0_i32_1 = arith.constant 0 : i32
    return %c0_i32, %c0_i32_0 : i32, i32
  }
  func.func @transform_3(%arg0: i32, %arg1: i32) -> (i32, i32) {
    %c0_i32 = arith.constant 0 : i32
    %c0_i32_0 = arith.constant 0 : i32
    %c0_i32_1 = arith.constant 0 : i32
    return %c0_i32, %c0_i32_0 : i32, i32
  }
  func.func @transform_4(%arg0: i32, %arg1: i32) -> (i32, i32) {
    %c0_i32 = arith.constant 0 : i32
    %c0_i32_0 = arith.constant 0 : i32
    %c0_i32_1 = arith.constant 0 : i32
    return %c0_i32, %c0_i32_0 : i32, i32
  }
  func.func @transform_5(%arg0: i32, %arg1: i32) -> (i32, i32) {
    %c0_i32 = arith.constant 0 : i32
    %c0_i32_0 = arith.constant 0 : i32
    %c0_i32_1 = arith.constant 0 : i32
    return %c0_i32, %c0_i32_0 : i32, i32
  }
}

</mosaic_0001>

<llo_original>
// kernel: tpu_custom_call.1
$region0: #{tpu_custom_call.1}
  #allocation0 [shape = 'u32[]', space=smem, size = 0x4, offset = 0x4, fixed_abs, tag = 'smem constant byte address 0x4 - core index']
  #allocation1 [shape = 'u32[144,128]{1,0:T(1,128)}', space=vmem, size = 0x12000, scoped, tag = 'internal scratch']
  %s0 = inlined_call_operand.hbm [shape: f32[16,512], index: 0, kind: input, shape index: {}]
  %s1 = inlined_call_operand.hbm [shape: bf16[512,256], index: 1, kind: input, shape index: {}]
  %s2 = inlined_call_operand.vmem [shape: f32[1,256], index: 2, kind: input, shape index: {}]
  %s3 = inlined_call_operand.hbm [shape: bf16[256,384], index: 3, kind: input, shape index: {}]
  %s4 = inlined_call_operand.vmem [shape: f32[1,384], index: 4, kind: input, shape index: {}]
  %s5 = inlined_call_operand.hbm [shape: f32[16,384], index: 5, kind: output, shape index: {}]
  %s6 = sld [smem:[#allocation0]]
  $region42: #{tpu_custom_call.1} parent=0
    _
  %s8 = ssub.s32 1, %s6
  %s9 = scalar_select 0, %s8, %s6
  $region1: #{tpu_custom_call.1} parent=0
    #allocation2 [shape = 'u8[32768]{0}', space=vmem, size = 0x8000, scoped, tag = 'input window, operand 0, single buffered']
    #allocation3 [shape = 's32[1]{0}', space=sflag, size = 0x4, scoped, tag = 'scoped memory for tpu_custom_call.1']
    #allocation4 [shape = 's32[1]{0}', space=sflag, size = 0x4, scoped, tag = 'scoped memory for tpu_custom_call.1']
    #allocation5 [shape = 'u8[262144]{0}', space=vmem, size = 0x40000, scoped, tag = 'input window, operand 1, single buffered']
    #allocation6 [shape = 's32[1]{0}', space=sflag, size = 0x4, scoped, tag = 'scoped memory for tpu_custom_call.1']
    #allocation7 [shape = 'u8[196608]{0}', space=vmem, size = 0x30000, scoped, tag = 'input window, operand 3, single buffered']
    #allocation8 [shape = 'u8[24576]{0}', space=vmem, size = 0x6000, scoped, tag = 'output window, operand 0, single buffered']
    %10 = vsyncpa [#allocation3], 0
    %11 = vsyncpa [#allocation6], 0
    %12 = vsyncpa [#allocation4], 0
    // Predicated region
    $region2: #{tpu_custom_call.1} parent=1 // pred_check
      _
    $region3: #{tpu_custom_call.1} parent=1 // pred_check_branch
      %14 = sbr.rel (0) target = $region5
    $region4: #{tpu_custom_call.1} parent=1 // pred_region
      %s16 = ssub.s32 1024, 1024
      %17 = vsyncadd [#allocation3], %s16
      %s18 = sshll.u32 [#allocation2], 4
      %s19 = int_to_ptr.vmem [resolvable:$true] %s18
      %24 = dma.hbm_to_vmem [thread:$0]  %s0, 1024, %s19, [#allocation3], 512, 512, 32
    $region5: #{tpu_custom_call.1} parent=1 // pred_fallthru
      _
    // Predicated region
    $region6: #{tpu_custom_call.1} parent=1 // pred_check
      _
    $region7: #{tpu_custom_call.1} parent=1 // pred_check_branch
      %26 = sbr.rel (0) target = $region9
    $region8: #{tpu_custom_call.1} parent=1 // pred_region
      %s28 = ssub.s32 8192, 8192
      %29 = vsyncadd [#allocation6], %s28
      %s30 = sshll.u32 [#allocation5], 4
      %s31 = int_to_ptr.vmem [resolvable:$true] %s30
      %36 = dma.hbm_to_vmem [thread:$0]  %s1, 8192, %s31, [#allocation6], 128, 128, 8
    $region9: #{tpu_custom_call.1} parent=1 // pred_fallthru
      _
    // Predicated region
    $region10: #{tpu_custom_call.1} parent=1 // pred_check
      _
    $region11: #{tpu_custom_call.1} parent=1 // pred_check_branch
      %38 = sbr.rel (0) target = $region13
    $region12: #{tpu_custom_call.1} parent=1 // pred_region
      _
    $region13: #{tpu_custom_call.1} parent=1 // pred_fallthru
      _
    // Predicated region
    $region14: #{tpu_custom_call.1} parent=1 // pred_check
      _
    $region15: #{tpu_custom_call.1} parent=1 // pred_check_branch
      %40 = sbr.rel (0) target = $region17
    $region16: #{tpu_custom_call.1} parent=1 // pred_region
      %s42 = ssub.s32 6144, 6144
      %43 = vsyncadd [#allocation6], %s42
      %s44 = sshll.u32 [#allocation7], 4
      %s45 = int_to_ptr.vmem [resolvable:$true] %s44
      %50 = dma.hbm_to_vmem [thread:$0]  %s3, 6144, %s45, [#allocation6], 192, 192, 12
    $region17: #{tpu_custom_call.1} parent=1 // pred_fallthru
      _
    // Predicated region
    $region18: #{tpu_custom_call.1} parent=1 // pred_check
      _
    $region19: #{tpu_custom_call.1} parent=1 // pred_check_branch
      %52 = sbr.rel (0) target = $region21
    $region20: #{tpu_custom_call.1} parent=1 // pred_region
      _
    $region21: #{tpu_custom_call.1} parent=1 // pred_fallthru
      _
    // Predicated region
    $region22: #{tpu_custom_call.1} parent=1 // pred_check
      _
    $region23: #{tpu_custom_call.1} parent=1 // pred_check_branch
      %54 = sbr.rel (0) target = $region25
    $region24: #{tpu_custom_call.1} parent=1 // pred_region
      %55 = dma.done [#allocation3], 1024
    $region25: #{tpu_custom_call.1} parent=1 // pred_fallthru
      _
    // Predicated region
    $region26: #{tpu_custom_call.1} parent=1 // pred_check
      _
    $region27: #{tpu_custom_call.1} parent=1 // pred_check_branch
      %57 = sbr.rel (0) target = $region29
    $region28: #{tpu_custom_call.1} parent=1 // pred_region
      %58 = dma.done [#allocation6], 8192
    $region29: #{tpu_custom_call.1} parent=1 // pred_fallthru
      _
    // Predicated region
    $region30: #{tpu_custom_call.1} parent=1 // pred_check
      _
    $region31: #{tpu_custom_call.1} parent=1 // pred_check_branch
      %60 = sbr.rel (0) target = $region33
    $region32: #{tpu_custom_call.1} parent=1 // pred_region
      %61 = dma.done [#allocation6], 6144
    $region33: #{tpu_custom_call.1} parent=1 // pred_fallthru
      _
    %v63 = vld [vmem:[#allocation2] sm:$0xff]
    %v64 = vld [vmem:[#allocation2 + $0x8] sm:$0xff]
    %v65 = vld [vmem:[#allocation2 + $0x10] sm:$0xff]
    %v66 = vld [vmem:[#allocation2 + $0x18] sm:$0xff]
    %v67 = vld [vmem:[#allocation2 + $0x20] sm:$0xff]
    %v68 = vld [vmem:[#allocation2 + $0x28] sm:$0xff]
    %v69 = vld [vmem:[#allocation2 + $0x30] sm:$0xff]
    %v70 = vld [vmem:[#allocation2 + $0x38] sm:$0xff]
    %v71 = vpack.c.bf16 %v67, %v63
    %v72 = vpack.c.bf16 %v68, %v64
    %v73 = vpack.c.bf16 %v69, %v65
    %v74 = vpack.c.bf16 %v70, %v66
    %v75 = vld [vmem:[#allocation5] sm:$0xff]
    %v76 = vld [vmem:[#allocation5 + $0x8] sm:$0xff]
    %v77 = vld [vmem:[#allocation5 + $0x10] sm:$0xff]
    %v78 = vld [vmem:[#allocation5 + $0x18] sm:$0xff]
    %v79 = vld [vmem:[#allocation5 + $0x20] sm:$0xff]
    %v80 = vld [vmem:[#allocation5 + $0x28] sm:$0xff]
    %v81 = vld [vmem:[#allocation5 + $0x30] sm:$0xff]
    %v82 = vld [vmem:[#allocation5 + $0x38] sm:$0xff]
    %v83 = vld [vmem:[#allocation5 + $0x40] sm:$0xff]
    %v84 = vld [vmem:[#allocation5 + $0x48] sm:$0xff]
    %v85 = vld [vmem:[#allocation5 + $0x50] sm:$0xff]
    %v86 = vld [vmem:[#allocation5 + $0x58] sm:$0xff]
    %v87 = vld [vmem:[#allocation5 + $0x60] sm:$0xff]
    %v88 = vld [vmem:[#allocation5 + $0x68] sm:$0xff]
    %v89 = vld [vmem:[#allocation5 + $0x70] sm:$0xff]
    %v90 = vld [vmem:[#allocation5 + $0x78] sm:$0xff]
    %v91 = vld [vmem:[#allocation5 + $0x80] sm:$0xff]
    %v92 = vld [vmem:[#allocation5 + $0x88] sm:$0xff]
    %v93 = vld [vmem:[#allocation5 + $0x90] sm:$0xff]
    %v94 = vld [vmem:[#allocation5 + $0x98] sm:$0xff]
    %v95 = vld [vmem:[#allocation5 + $0xa0] sm:$0xff]
    %v96 = vld [vmem:[#allocation5 + $0xa8] sm:$0xff]
    %v97 = vld [vmem:[#allocation5 + $0xb0] sm:$0xff]
    %v98 = vld [vmem:[#allocation5 + $0xb8] sm:$0xff]
    %v99 = vld [vmem:[#allocation5 + $0xc0] sm:$0xff]
    %v100 = vld [vmem:[#allocation5 + $0xc8] sm:$0xff]
    %v101 = vld [vmem:[#allocation5 + $0xd0] sm:$0xff]
    %v102 = vld [vmem:[#allocation5 + $0xd8] sm:$0xff]
    %v103 = vld [vmem:[#allocation5 + $0xe0] sm:$0xff]
    %v104 = vld [vmem:[#allocation5 + $0xe8] sm:$0xff]
    %v105 = vld [vmem:[#allocation5 + $0xf0] sm:$0xff]
    %v106 = vld [vmem:[#allocation5 + $0xf8] sm:$0xff]
    %v107 = vld [vmem:[#allocation5 + $0x100] sm:$0xff]
    %v108 = vld [vmem:[#allocation5 + $0x108] sm:$0xff]
    %v109 = vld [vmem:[#allocation5 + $0x110] sm:$0xff]
    %v110 = vld [vmem:[#allocation5 + $0x118] sm:$0xff]
    %v111 = vld [vmem:[#allocation5 + $0x120] sm:$0xff]
    %v112 = vld [vmem:[#allocation5 + $0x128] sm:$0xff]
    %v113 = vld [vmem:[#allocation5 + $0x130] sm:$0xff]
    %v114 = vld [vmem:[#allocation5 + $0x138] sm:$0xff]
    %v115 = vld [vmem:[#allocation5 + $0x140] sm:$0xff]
    %v116 = vld [vmem:[#allocation5 + $0x148] sm:$0xff]
    %v117 = vld [vmem:[#allocation5 + $0x150] sm:$0xff]
    %v118 = vld [vmem:[#allocation5 + $0x158] sm:$0xff]
    %v119 = vld [vmem:[#allocation5 + $0x160] sm:$0xff]
    %v120 = vld [vmem:[#allocation5 + $0x168] sm:$0xff]
    %v121 = vld [vmem:[#allocation5 + $0x170] sm:$0xff]
    %v122 = vld [vmem:[#allocation5 + $0x178] sm:$0xff]
    %v123 = vld [vmem:[#allocation5 + $0x180] sm:$0xff]
    %v124 = vld [vmem:[#allocation5 + $0x188] sm:$0xff]
    %v125 = vld [vmem:[#allocation5 + $0x190] sm:$0xff]
    %v126 = vld [vmem:[#allocation5 + $0x198] sm:$0xff]
    %v127 = vld [vmem:[#allocation5 + $0x1a0] sm:$0xff]
    %v128 = vld [vmem:[#allocation5 + $0x1a8] sm:$0xff]
    %v129 = vld [vmem:[#allocation5 + $0x1b0] sm:$0xff]
    %v130 = vld [vmem:[#allocation5 + $0x1b8] sm:$0xff]
    %v131 = vld [vmem:[#allocation5 + $0x1c0] sm:$0xff]
    %v132 = vld [vmem:[#allocation5 + $0x1c8] sm:$0xff]
    %v133 = vld [vmem:[#allocation5 + $0x1d0] sm:$0xff]
    %v134 = vld [vmem:[#allocation5 + $0x1d8] sm:$0xff]
    %v135 = vld [vmem:[#allocation5 + $0x1e0] sm:$0xff]
    %v136 = vld [vmem:[#allocation5 + $0x1e8] sm:$0xff]
    %v137 = vld [vmem:[#allocation5 + $0x1f0] sm:$0xff]
    %v138 = vld [vmem:[#allocation5 + $0x1f8] sm:$0xff]
    %v139 = vld [vmem:[%s2] sm:$0x3]
    %v141 = vlaneseq
    %v142 = vshrl.u32 %v141, 7
    %v143 = vsub.s32 0, %v142
    %v144 = vrot.slane %v139, %v143
    %v145 = vlaneseq
    %v146 = vshrl.u32 %v145, 7
    %v147 = vsub.s32 1, %v146
    %v148 = vrot.slane %v139, %v147
    %v215 = vunpack.c.l.b16 %v75
    %v216 = vunpack.c.h.b16 %v75
    %v217 = vunpack.c.l.b16 %v76
    %v218 = vunpack.c.h.b16 %v76
    %v219 = vunpack.c.l.b16 %v77
    %v220 = vunpack.c.h.b16 %v77
    %v221 = vunpack.c.l.b16 %v78
    %v222 = vunpack.c.h.b16 %v78
    %v223 = vunpack.c.l.b16 %v79
    %v224 = vunpack.c.h.b16 %v79
    %v225 = vunpack.c.l.b16 %v80
    %v226 = vunpack.c.h.b16 %v80
    %v227 = vunpack.c.l.b16 %v81
    %v228 = vunpack.c.h.b16 %v81
    %v229 = vunpack.c.l.b16 %v82
    %v230 = vunpack.c.h.b16 %v82
    %v231 = vunpack.c.l.b16 %v83
    %v232 = vunpack.c.h.b16 %v83
    %v233 = vunpack.c.l.b16 %v84
    %v234 = vunpack.c.h.b16 %v84
    %v235 = vunpack.c.l.b16 %v85
    %v236 = vunpack.c.h.b16 %v85
    %v237 = vunpack.c.l.b16 %v86
    %v238 = vunpack.c.h.b16 %v86
    %v239 = vunpack.c.l.b16 %v87
    %v240 = vunpack.c.h.b16 %v87
    %v241 = vunpack.c.l.b16 %v88
    %v242 = vunpack.c.h.b16 %v88
    %v243 = vunpack.c.l.b16 %v89
    %v244 = vunpack.c.h.b16 %v89
    %v245 = vunpack.c.l.b16 %v90
    %v246 = vunpack.c.h.b16 %v90
    %v247 = vunpack.c.l.b16 %v91
    %v248 = vunpack.c.h.b16 %v91
    %v249 = vunpack.c.l.b16 %v92
    %v250 = vunpack.c.h.b16 %v92
    %v251 = vunpack.c.l.b16 %v93
    %v252 = vunpack.c.h.b16 %v93
    %v253 = vunpack.c.l.b16 %v94
    %v254 = vunpack.c.h.b16 %v94
    %v255 = vunpack.c.l.b16 %v95
    %v256 = vunpack.c.h.b16 %v95
    %v257 = vunpack.c.l.b16 %v96
    %v258 = vunpack.c.h.b16 %v96
    %v259 = vunpack.c.l.b16 %v97
    %v260 = vunpack.c.h.b16 %v97
    %v261 = vunpack.c.l.b16 %v98
    %v262 = vunpack.c.h.b16 %v98
    %v263 = vunpack.c.l.b16 %v99
    %v264 = vunpack.c.h.b16 %v99
    %v265 = vunpack.c.l.b16 %v100
    %v266 = vunpack.c.h.b16 %v100
    %v267 = vunpack.c.l.b16 %v101
    %v268 = vunpack.c.h.b16 %v101
    %v269 = vunpack.c.l.b16 %v102
    %v270 = vunpack.c.h.b16 %v102
    %v271 = vunpack.c.l.b16 %v103
    %v272 = vunpack.c.h.b16 %v103
    %v273 = vunpack.c.l.b16 %v104
    %v274 = vunpack.c.h.b16 %v104
    %v275 = vunpack.c.l.b16 %v105
    %v276 = vunpack.c.h.b16 %v105
    %v277 = vunpack.c.l.b16 %v106
    %v278 = vunpack.c.h.b16 %v106
    %v279 = vunpack.c.l.b16 %v107
    %v280 = vunpack.c.h.b16 %v107
    %v281 = vunpack.c.l.b16 %v108
    %v282 = vunpack.c.h.b16 %v108
    %v283 = vunpack.c.l.b16 %v109
    %v284 = vunpack.c.h.b16 %v109
    %v285 = vunpack.c.l.b16 %v110
    %v286 = vunpack.c.h.b16 %v110
    %v287 = vunpack.c.l.b16 %v111
    %v288 = vunpack.c.h.b16 %v111
    %v289 = vunpack.c.l.b16 %v112
    %v290 = vunpack.c.h.b16 %v112
    %v291 = vunpack.c.l.b16 %v113
    %v292 = vunpack.c.h.b16 %v113
    %v293 = vunpack.c.l.b16 %v114
    %v294 = vunpack.c.h.b16 %v114
    %v295 = vunpack.c.l.b16 %v115
    %v296 = vunpack.c.h.b16 %v115
    %v297 = vunpack.c.l.b16 %v116
    %v298 = vunpack.c.h.b16 %v116
    %v299 = vunpack.c.l.b16 %v117
    %v300 = vunpack.c.h.b16 %v117
    %v301 = vunpack.c.l.b16 %v118
    %v302 = vunpack.c.h.b16 %v118
    %v303 = vunpack.c.l.b16 %v119
    %v304 = vunpack.c.h.b16 %v119
    %v305 = vunpack.c.l.b16 %v120
    %v306 = vunpack.c.h.b16 %v120
    %v307 = vunpack.c.l.b16 %v121
    %v308 = vunpack.c.h.b16 %v121
    %v309 = vunpack.c.l.b16 %v122
    %v310 = vunpack.c.h.b16 %v122
    %v311 = vunpack.c.l.b16 %v123
    %v312 = vunpack.c.h.b16 %v123
    %v313 = vunpack.c.l.b16 %v124
    %v314 = vunpack.c.h.b16 %v124
    %v315 = vunpack.c.l.b16 %v125
    %v316 = vunpack.c.h.b16 %v125
    %v317 = vunpack.c.l.b16 %v126
    %v318 = vunpack.c.h.b16 %v126
    %v319 = vunpack.c.l.b16 %v127
    %v320 = vunpack.c.h.b16 %v127
    %v321 = vunpack.c.l.b16 %v128
    %v322 = vunpack.c.h.b16 %v128
    %v323 = vunpack.c.l.b16 %v129
    %v324 = vunpack.c.h.b16 %v129
    %v325 = vunpack.c.l.b16 %v130
    %v326 = vunpack.c.h.b16 %v130
    %v327 = vunpack.c.l.b16 %v131
    %v328 = vunpack.c.h.b16 %v131
    %v329 = vunpack.c.l.b16 %v132
    %v330 = vunpack.c.h.b16 %v132
    %v331 = vunpack.c.l.b16 %v133
    %v332 = vunpack.c.h.b16 %v133
    %v333 = vunpack.c.l.b16 %v134
    %v334 = vunpack.c.h.b16 %v134
    %v335 = vunpack.c.l.b16 %v135
    %v336 = vunpack.c.h.b16 %v135
    %v337 = vunpack.c.l.b16 %v136
    %v338 = vunpack.c.h.b16 %v136
    %v339 = vunpack.c.l.b16 %v137
    %v340 = vunpack.c.h.b16 %v137
    %v341 = vunpack.c.l.b16 %v138
    %v342 = vunpack.c.h.b16 %v138
    %v343 = vpack.c.b16 %v217, %v215
    %v344 = vpack.c.b16 %v218, %v216
    %v345 = vpack.c.b16 %v221, %v219
    %v346 = vpack.c.b16 %v222, %v220
    %v347 = vpack.c.b16 %v225, %v223
    %v348 = vpack.c.b16 %v226, %v224
    %v349 = vpack.c.b16 %v229, %v227
    %v350 = vpack.c.b16 %v230, %v228
    %v351 = vpack.c.b16 %v233, %v231
    %v352 = vpack.c.b16 %v234, %v232
    %v353 = vpack.c.b16 %v237, %v235
    %v354 = vpack.c.b16 %v238, %v236
    %v355 = vpack.c.b16 %v241, %v239
    %v356 = vpack.c.b16 %v242, %v240
    %v357 = vpack.c.b16 %v245, %v243
    %v358 = vpack.c.b16 %v246, %v244
    %v359 = vpack.c.b16 %v249, %v247
    %v360 = vpack.c.b16 %v250, %v248
    %v361 = vpack.c.b16 %v253, %v251
    %v362 = vpack.c.b16 %v254, %v252
    %v363 = vpack.c.b16 %v257, %v255
    %v364 = vpack.c.b16 %v258, %v256
    %v365 = vpack.c.b16 %v261, %v259
    %v366 = vpack.c.b16 %v262, %v260
    %v367 = vpack.c.b16 %v265, %v263
    %v368 = vpack.c.b16 %v266, %v264
    %v369 = vpack.c.b16 %v269, %v267
    %v370 = vpack.c.b16 %v270, %v268
    %v371 = vpack.c.b16 %v273, %v271
    %v372 = vpack.c.b16 %v274, %v272
    %v373 = vpack.c.b16 %v277, %v275
    %v374 = vpack.c.b16 %v278, %v276
    %v375 = vpack.c.b16 %v281, %v279
    %v376 = vpack.c.b16 %v282, %v280
    %v377 = vpack.c.b16 %v285, %v283
    %v378 = vpack.c.b16 %v286, %v284
    %v379 = vpack.c.b16 %v289, %v287
    %v380 = vpack.c.b16 %v290, %v288
    %v381 = vpack.c.b16 %v293, %v291
    %v382 = vpack.c.b16 %v294, %v292
    %v383 = vpack.c.b16 %v297, %v295
    %v384 = vpack.c.b16 %v298, %v296
    %v385 = vpack.c.b16 %v301, %v299
    %v386 = vpack.c.b16 %v302, %v300
    %v387 = vpack.c.b16 %v305, %v303
    %v388 = vpack.c.b16 %v306, %v304
    %v389 = vpack.c.b16 %v309, %v307
    %v390 = vpack.c.b16 %v310, %v308
    %v391 = vpack.c.b16 %v313, %v311
    %v392 = vpack.c.b16 %v314, %v312
    %v393 = vpack.c.b16 %v317, %v315
    %v394 = vpack.c.b16 %v318, %v316
    %v395 = vpack.c.b16 %v321, %v319
    %v396 = vpack.c.b16 %v322, %v320
    %v397 = vpack.c.b16 %v325, %v323
    %v398 = vpack.c.b16 %v326, %v324
    %v399 = vpack.c.b16 %v329, %v327
    %v400 = vpack.c.b16 %v330, %v328
    %v401 = vpack.c.b16 %v333, %v331
    %v402 = vpack.c.b16 %v334, %v332
    %v403 = vpack.c.b16 %v337, %v335
    %v404 = vpack.c.b16 %v338, %v336
    %v405 = vpack.c.b16 %v341, %v339
    %v406 = vpack.c.b16 %v342, %v340
    %471 = vmatprep.subr.bf16.mxu0 %v344
    %472 = vmatpush1.bf16.msra.mxu0 %v343
    %473 = vmatprep.subr.bf16.mxu0 %v346
    %474 = vmatpush1.bf16.msra.mxu0 %v345
    %475 = vmatprep.subr.bf16.mxu0 %v348
    %476 = vmatpush1.bf16.msra.mxu0 %v347
    %477 = vmatprep.subr.bf16.mxu0 %v350
    %478 = vmatpush1.bf16.msra.mxu0 %v349
    %479 = vmatprep.subr.bf16.mxu0 %v352
    %480 = vmatpush1.bf16.msra.mxu0 %v351
    %481 = vmatprep.subr.bf16.mxu0 %v354
    %482 = vmatpush1.bf16.msra.mxu0 %v353
    %483 = vmatprep.subr.bf16.mxu0 %v356
    %484 = vmatpush1.bf16.msra.mxu0 %v355
    %485 = vmatprep.subr.bf16.mxu0 %v358
    %486 = vmatpush1.bf16.msra.mxu0 %v357
    %487 = vmatprep.subr.bf16.mxu0 %v360
    %488 = vmatpush1.bf16.msra.mxu0 %v359
    %489 = vmatprep.subr.bf16.mxu0 %v362
    %490 = vmatpush1.bf16.msra.mxu0 %v361
    %491 = vmatprep.subr.bf16.mxu0 %v364
    %492 = vmatpush1.bf16.msra.mxu0 %v363
    %493 = vmatprep.subr.bf16.mxu0 %v366
    %494 = vmatpush1.bf16.msra.mxu0 %v365
    %495 = vmatprep.subr.bf16.mxu0 %v368
    %496 = vmatpush1.bf16.msra.mxu0 %v367
    %497 = vmatprep.subr.bf16.mxu0 %v370
    %498 = vmatpush1.bf16.msra.mxu0 %v369
    %499 = vmatprep.subr.bf16.mxu0 %v372
    %500 = vmatpush1.bf16.msra.mxu0 %v371
    %501 = vmatprep.subr.bf16.mxu0 %v374
    %502 = vmatpush1.bf16.msra.mxu0 %v373
    %503 = vmatprep.mubr.bf16.mxu0 %v72
    %504 = vmatmul.mubr.bf16.gmra.mrb[0].mxu0 %v71
    %v505 = vpop.f32.mrb[0].mxu0
    %v506 = vadd.f32 %v144, %v505
    %v507 = vpop.f32.mrb[0].mxu0
    %v508 = vadd.f32 %v148, %v507
    %v509 = vpop.f32.mrb[0].mxu0
    %v510 = vadd.f32 %v144, %v509
    %v511 = vpop.f32.mrb[0].mxu0
    %v512 = vadd.f32 %v148, %v511
    %513 = vdwg.mxu0
    %514 = vmatprep.subr.bf16.mxu0 %v376
    %515 = vmatpush1.bf16.msra.mxu0 %v375
    %516 = vmatprep.subr.bf16.mxu0 %v378
    %517 = vmatpush1.bf16.msra.mxu0 %v377
    %518 = vmatprep.subr.bf16.mxu0 %v380
    %519 = vmatpush1.bf16.msra.mxu0 %v379
    %520 = vmatprep.subr.bf16.mxu0 %v382
    %521 = vmatpush1.bf16.msra.mxu0 %v381
    %522 = vmatprep.subr.bf16.mxu0 %v384
    %523 = vmatpush1.bf16.msra.mxu0 %v383
    %524 = vmatprep.subr.bf16.mxu0 %v386
    %525 = vmatpush1.bf16.msra.mxu0 %v385
    %526 = vmatprep.subr.bf16.mxu0 %v388
    %527 = vmatpush1.bf16.msra.mxu0 %v387
    %528 = vmatprep.subr.bf16.mxu0 %v390
    %529 = vmatpush1.bf16.msra.mxu0 %v389
    %530 = vmatprep.subr.bf16.mxu0 %v392
    %531 = vmatpush1.bf16.msra.mxu0 %v391
    %532 = vmatprep.subr.bf16.mxu0 %v394
    %533 = vmatpush1.bf16.msra.mxu0 %v393
    %534 = vmatprep.subr.bf16.mxu0 %v396
    %535 = vmatpush1.bf16.msra.mxu0 %v395
    %536 = vmatprep.subr.bf16.mxu0 %v398
    %537 = vmatpush1.bf16.msra.mxu0 %v397
    %538 = vmatprep.subr.bf16.mxu0 %v400
    %539 = vmatpush1.bf16.msra.mxu0 %v399
    %540 = vmatprep.subr.bf16.mxu0 %v402
    %541 = vmatpush1.bf16.msra.mxu0 %v401
    %542 = vmatprep.subr.bf16.mxu0 %v404
    %543 = vmatpush1.bf16.msra.mxu0 %v403
    %544 = vmatprep.subr.bf16.mxu0 %v406
    %545 = vmatpush1.bf16.msra.mxu0 %v405
    %546 = vmatprep.mubr.bf16.mxu0 %v74
    %547 = vmatmul.mubr.bf16.gmra.mrb[0].mxu0 %v73
    %v548 = vpop.f32.mrb[0].mxu0
    %v549 = vadd.f32 %v506, %v548
    %v550 = vpop.f32.mrb[0].mxu0
    %v551 = vadd.f32 %v508, %v550
    %v552 = vpop.f32.mrb[0].mxu0
    %v553 = vadd.f32 %v510, %v552
    %v554 = vpop.f32.mrb[0].mxu0
    %v555 = vadd.f32 %v512, %v554
    %556 = vdwg.mxu0
    %v557 = vmax.f32 %v549, 0.0
    %v558 = vmax.f32 %v551, 0.0
    %v559 = vmax.f32 %v553, 0.0
    %v560 = vmax.f32 %v555, 0.0
    %v561 = vpack.c.bf16 %v559, %v557
    %v562 = vpack.c.bf16 %v560, %v558
    %v563 = vld [vmem:[#allocation7] sm:$0xff]
    %v564 = vld [vmem:[#allocation7 + $0x8] sm:$0xf]
    %v565 = vld [vmem:[#allocation7 + $0xc] sm:$0xff]
    %v566 = vld [vmem:[#allocation7 + $0x14] sm:$0xf]
    %v567 = vld [vmem:[#allocation7 + $0x18] sm:$0xff]
    %v568 = vld [vmem:[#allocation7 + $0x20] sm:$0xf]
    %v569 = vld [vmem:[#allocation7 + $0x24] sm:$0xff]
    %v570 = vld [vmem:[#allocation7 + $0x2c] sm:$0xf]
    %v571 = vld [vmem:[#allocation7 + $0x30] sm:$0xff]
    %v572 = vld [vmem:[#allocation7 + $0x38] sm:$0xf]
    %v573 = vld [vmem:[#allocation7 + $0x3c] sm:$0xff]
    %v574 = vld [vmem:[#allocation7 + $0x44] sm:$0xf]
    %v575 = vld [vmem:[#allocation7 + $0x48] sm:$0xff]
    %v576 = vld [vmem:[#allocation7 + $0x50] sm:$0xf]
    %v577 = vld [vmem:[#allocation7 + $0x54] sm:$0xff]
    %v578 = vld [vmem:[#allocation7 + $0x5c] sm:$0xf]
    %v579 = vld [vmem:[#allocation7 + $0x60] sm:$0xff]
    %v580 = vld [vmem:[#allocation7 + $0x68] sm:$0xf]
    %v581 = vld [vmem:[#allocation7 + $0x6c] sm:$0xff]
    %v582 = vld [vmem:[#allocation7 + $0x74] sm:$0xf]
    %v583 = vld [vmem:[#allocation7 + $0x78] sm:$0xff]
    %v584 = vld [vmem:[#allocation7 + $0x80] sm:$0xf]
    %v585 = vld [vmem:[#allocation7 + $0x84] sm:$0xff]
    %v586 = vld [vmem:[#allocation7 + $0x8c] sm:$0xf]
    %v587 = vld [vmem:[#allocation7 + $0x90] sm:$0xff]
    %v588 = vld [vmem:[#allocation7 + $0x98] sm:$0xf]
    %v589 = vld [vmem:[#allocation7 + $0x9c] sm:$0xff]
    %v590 = vld [vmem:[#allocation7 + $0xa4] sm:$0xf]
    %v591 = vld [vmem:[#allocation7 + $0xa8] sm:$0xff]
    %v592 = vld [vmem:[#allocation7 + $0xb0] sm:$0xf]
    %v593 = vld [vmem:[#allocation7 + $0xb4] sm:$0xff]
    %v594 = vld [vmem:[#allocation7 + $0xbc] sm:$0xf]
    %v595 = vld [vmem:[#allocation7 + $0xc0] sm:$0xff]
    %v596 = vld [vmem:[#allocation7 + $0xc8] sm:$0xf]
    %v597 = vld [vmem:[#allocation7 + $0xcc] sm:$0xff]
    %v598 = vld [vmem:[#allocation7 + $0xd4] sm:$0xf]
    %v599 = vld [vmem:[#allocation7 + $0xd8] sm:$0xff]
    %v600 = vld [vmem:[#allocation7 + $0xe0] sm:$0xf]
    %v601 = vld [vmem:[#allocation7 + $0xe4] sm:$0xff]
    %v602 = vld [vmem:[#allocation7 + $0xec] sm:$0xf]
    %v603 = vld [vmem:[#allocation7 + $0xf0] sm:$0xff]
    %v604 = vld [vmem:[#allocation7 + $0xf8] sm:$0xf]
    %v605 = vld [vmem:[#allocation7 + $0xfc] sm:$0xff]
    %v606 = vld [vmem:[#allocation7 + $0x104] sm:$0xf]
    %v607 = vld [vmem:[#allocation7 + $0x108] sm:$0xff]
    %v608 = vld [vmem:[#allocation7 + $0x110] sm:$0xf]
    %v609 = vld [vmem:[#allocation7 + $0x114] sm:$0xff]
    %v610 = vld [vmem:[#allocation7 + $0x11c] sm:$0xf]
    %v611 = vld [vmem:[#allocation7 + $0x120] sm:$0xff]
    %v612 = vld [vmem:[#allocation7 + $0x128] sm:$0xf]
    %v613 = vld [vmem:[#allocation7 + $0x12c] sm:$0xff]
    %v614 = vld [vmem:[#allocation7 + $0x134] sm:$0xf]
    %v615 = vld [vmem:[#allocation7 + $0x138] sm:$0xff]
    %v616 = vld [vmem:[#allocation7 + $0x140] sm:$0xf]
    %v617 = vld [vmem:[#allocation7 + $0x144] sm:$0xff]
    %v618 = vld [vmem:[#allocation7 + $0x14c] sm:$0xf]
    %v619 = vld [vmem:[#allocation7 + $0x150] sm:$0xff]
    %v620 = vld [vmem:[#allocation7 + $0x158] sm:$0xf]
    %v621 = vld [vmem:[#allocation7 + $0x15c] sm:$0xff]
    %v622 = vld [vmem:[#allocation7 + $0x164] sm:$0xf]
    %v623 = vld [vmem:[#allocation7 + $0x168] sm:$0xff]
    %v624 = vld [vmem:[#allocation7 + $0x170] sm:$0xf]
    %v625 = vld [vmem:[#allocation7 + $0x174] sm:$0xff]
    %v626 = vld [vmem:[#allocation7 + $0x17c] sm:$0xf]
    %v627 = vld [vmem:[%s4] sm:$0x7]
    %v629 = vlaneseq
    %v630 = vshrl.u32 %v629, 7
    %v631 = vsub.s32 0, %v630
    %v632 = vrot.slane %v627, %v631
    %v633 = vlaneseq
    %v634 = vshrl.u32 %v633, 7
    %v635 = vsub.s32 1, %v634
    %v636 = vrot.slane %v627, %v635
    %v637 = vlaneseq
    %v638 = vshrl.u32 %v637, 7
    %v639 = vsub.s32 2, %v638
    %v640 = vrot.slane %v627, %v639
    %v708 = vunpack.c.l.b16 %v563
    %v709 = vunpack.c.h.b16 %v563
    %v710 = vunpack.c.l.b16 %v564
    %v711 = vunpack.c.l.b16 %v565
    %v712 = vunpack.c.h.b16 %v565
    %v713 = vunpack.c.l.b16 %v566
    %v714 = vunpack.c.l.b16 %v567
    %v715 = vunpack.c.h.b16 %v567
    %v716 = vunpack.c.l.b16 %v568
    %v717 = vunpack.c.l.b16 %v569
    %v718 = vunpack.c.h.b16 %v569
    %v719 = vunpack.c.l.b16 %v570
    %v720 = vunpack.c.l.b16 %v571
    %v721 = vunpack.c.h.b16 %v571
    %v722 = vunpack.c.l.b16 %v572
    %v723 = vunpack.c.l.b16 %v573
    %v724 = vunpack.c.h.b16 %v573
    %v725 = vunpack.c.l.b16 %v574
    %v726 = vunpack.c.l.b16 %v575
    %v727 = vunpack.c.h.b16 %v575
    %v728 = vunpack.c.l.b16 %v576
    %v729 = vunpack.c.l.b16 %v577
    %v730 = vunpack.c.h.b16 %v577
    %v731 = vunpack.c.l.b16 %v578
    %v732 = vunpack.c.l.b16 %v579
    %v733 = vunpack.c.h.b16 %v579
    %v734 = vunpack.c.l.b16 %v580
    %v735 = vunpack.c.l.b16 %v581
    %v736 = vunpack.c.h.b16 %v581
    %v737 = vunpack.c.l.b16 %v582
    %v738 = vunpack.c.l.b16 %v583
    %v739 = vunpack.c.h.b16 %v583
    %v740 = vunpack.c.l.b16 %v584
    %v741 = vunpack.c.l.b16 %v585
    %v742 = vunpack.c.h.b16 %v585
    %v743 = vunpack.c.l.b16 %v586
    %v744 = vunpack.c.l.b16 %v587
    %v745 = vunpack.c.h.b16 %v587
    %v746 = vunpack.c.l.b16 %v588
    %v747 = vunpack.c.l.b16 %v589
    %v748 = vunpack.c.h.b16 %v589
    %v749 = vunpack.c.l.b16 %v590
    %v750 = vunpack.c.l.b16 %v591
    %v751 = vunpack.c.h.b16 %v591
    %v752 = vunpack.c.l.b16 %v592
    %v753 = vunpack.c.l.b16 %v593
    %v754 = vunpack.c.h.b16 %v593
    %v755 = vunpack.c.l.b16 %v594
    %v756 = vunpack.c.l.b16 %v595
    %v757 = vunpack.c.h.b16 %v595
    %v758 = vunpack.c.l.b16 %v596
    %v759 = vunpack.c.l.b16 %v597
    %v760 = vunpack.c.h.b16 %v597
    %v761 = vunpack.c.l.b16 %v598
    %v762 = vunpack.c.l.b16 %v599
    %v763 = vunpack.c.h.b16 %v599
    %v764 = vunpack.c.l.b16 %v600
    %v765 = vunpack.c.l.b16 %v601
    %v766 = vunpack.c.h.b16 %v601
    %v767 = vunpack.c.l.b16 %v602
    %v768 = vunpack.c.l.b16 %v603
    %v769 = vunpack.c.h.b16 %v603
    %v770 = vunpack.c.l.b16 %v604
    %v771 = vunpack.c.l.b16 %v605
    %v772 = vunpack.c.h.b16 %v605
    %v773 = vunpack.c.l.b16 %v606
    %v774 = vunpack.c.l.b16 %v607
    %v775 = vunpack.c.h.b16 %v607
    %v776 = vunpack.c.l.b16 %v608
    %v777 = vunpack.c.l.b16 %v609
    %v778 = vunpack.c.h.b16 %v609
    %v779 = vunpack.c.l.b16 %v610
    %v780 = vunpack.c.l.b16 %v611
    %v781 = vunpack.c.h.b16 %v611
    %v782 = vunpack.c.l.b16 %v612
    %v783 = vunpack.c.l.b16 %v613
    %v784 = vunpack.c.h.b16 %v613
    %v785 = vunpack.c.l.b16 %v614
    %v786 = vunpack.c.l.b16 %v615
    %v787 = vunpack.c.h.b16 %v615
    %v788 = vunpack.c.l.b16 %v616
    %v789 = vunpack.c.l.b16 %v617
    %v790 = vunpack.c.h.b16 %v617
    %v791 = vunpack.c.l.b16 %v618
    %v792 = vunpack.c.l.b16 %v619
    %v793 = vunpack.c.h.b16 %v619
    %v794 = vunpack.c.l.b16 %v620
    %v795 = vunpack.c.l.b16 %v621
    %v796 = vunpack.c.h.b16 %v621
    %v797 = vunpack.c.l.b16 %v622
    %v798 = vunpack.c.l.b16 %v623
    %v799 = vunpack.c.h.b16 %v623
    %v800 = vunpack.c.l.b16 %v624
    %v801 = vunpack.c.l.b16 %v625
    %v802 = vunpack.c.h.b16 %v625
    %v803 = vunpack.c.l.b16 %v626
    %v804 = vpack.c.b16 %v711, %v708
    %v805 = vpack.c.b16 %v712, %v709
    %v806 = vpack.c.b16 %v713, %v710
    %v807 = vpack.c.b16 %v717, %v714
    %v808 = vpack.c.b16 %v718, %v715
    %v809 = vpack.c.b16 %v719, %v716
    %v810 = vpack.c.b16 %v723, %v720
    %v811 = vpack.c.b16 %v724, %v721
    %v812 = vpack.c.b16 %v725, %v722
    %v813 = vpack.c.b16 %v729, %v726
    %v814 = vpack.c.b16 %v730, %v727
    %v815 = vpack.c.b16 %v731, %v728
    %v816 = vpack.c.b16 %v735, %v732
    %v817 = vpack.c.b16 %v736, %v733
    %v818 = vpack.c.b16 %v737, %v734
    %v819 = vpack.c.b16 %v741, %v738
    %v820 = vpack.c.b16 %v742, %v739
    %v821 = vpack.c.b16 %v743, %v740
    %v822 = vpack.c.b16 %v747, %v744
    %v823 = vpack.c.b16 %v748, %v745
    %v824 = vpack.c.b16 %v749, %v746
    %v825 = vpack.c.b16 %v753, %v750
    %v826 = vpack.c.b16 %v754, %v751
    %v827 = vpack.c.b16 %v755, %v752
    %v828 = vpack.c.b16 %v759, %v756
    %v829 = vpack.c.b16 %v760, %v757
    %v830 = vpack.c.b16 %v761, %v758
    %v831 = vpack.c.b16 %v765, %v762
    %v832 = vpack.c.b16 %v766, %v763
    %v833 = vpack.c.b16 %v767, %v764
    %v834 = vpack.c.b16 %v771, %v768
    %v835 = vpack.c.b16 %v772, %v769
    %v836 = vpack.c.b16 %v773, %v770
    %v837 = vpack.c.b16 %v777, %v774
    %v838 = vpack.c.b16 %v778, %v775
    %v839 = vpack.c.b16 %v779, %v776
    %v840 = vpack.c.b16 %v783, %v780
    %v841 = vpack.c.b16 %v784, %v781
    %v842 = vpack.c.b16 %v785, %v782
    %v843 = vpack.c.b16 %v789, %v786
    %v844 = vpack.c.b16 %v790, %v787
    %v845 = vpack.c.b16 %v791, %v788
    %v846 = vpack.c.b16 %v795, %v792
    %v847 = vpack.c.b16 %v796, %v793
    %v848 = vpack.c.b16 %v797, %v794
    %v849 = vpack.c.b16 %v801, %v798
    %v850 = vpack.c.b16 %v802, %v799
    %v851 = vpack.c.b16 %v803, %v800
    %900 = vmatprep.subr.bf16.mxu0 %v805
    %901 = vmatpush1.bf16.msra.mxu0 %v804
    %902 = vmatprep.subr.bf16.mxu0 %v808
    %903 = vmatpush1.bf16.msra.mxu0 %v807
    %904 = vmatprep.subr.bf16.mxu0 %v811
    %905 = vmatpush1.bf16.msra.mxu0 %v810
    %906 = vmatprep.subr.bf16.mxu0 %v814
    %907 = vmatpush1.bf16.msra.mxu0 %v813
    %908 = vmatprep.subr.bf16.mxu0 %v817
    %909 = vmatpush1.bf16.msra.mxu0 %v816
    %910 = vmatprep.subr.bf16.mxu0 %v820
    %911 = vmatpush1.bf16.msra.mxu0 %v819
    %912 = vmatprep.subr.bf16.mxu0 %v823
    %913 = vmatpush1.bf16.msra.mxu0 %v822
    %914 = vmatprep.subr.bf16.mxu0 %v826
    %915 = vmatpush1.bf16.msra.mxu0 %v825
    %916 = vmatprep.subr.bf16.mxu0 %v829
    %917 = vmatpush1.bf16.msra.mxu0 %v828
    %918 = vmatprep.subr.bf16.mxu0 %v832
    %919 = vmatpush1.bf16.msra.mxu0 %v831
    %920 = vmatprep.subr.bf16.mxu0 %v835
    %921 = vmatpush1.bf16.msra.mxu0 %v834
    %922 = vmatprep.subr.bf16.mxu0 %v838
    %923 = vmatpush1.bf16.msra.mxu0 %v837
    %924 = vmatprep.subr.bf16.mxu0 %v841
    %925 = vmatpush1.bf16.msra.mxu0 %v840
    %926 = vmatprep.subr.bf16.mxu0 %v844
    %927 = vmatpush1.bf16.msra.mxu0 %v843
    %928 = vmatprep.subr.bf16.mxu0 %v847
    %929 = vmatpush1.bf16.msra.mxu0 %v846
    %930 = vmatprep.subr.bf16.mxu0 %v850
    %931 = vmatpush1.bf16.msra.mxu0 %v849
    %932 = vmatprep.mubr.bf16.mxu0 %v562
    %933 = vmatmul.mubr.bf16.gmra.mrb[0].mxu0 %v561
    %v934 = vpop.f32.mrb[0].mxu0
    %v935 = vadd.f32 %v632, %v934
    %v936 = vpop.f32.mrb[0].mxu0
    %v937 = vadd.f32 %v636, %v936
    %v938 = vpop.f32.mrb[0].mxu0
    %v939 = vadd.f32 %v632, %v938
    %v940 = vpop.f32.mrb[0].mxu0
    %v941 = vadd.f32 %v636, %v940
    %942 = vdwg.mxu0
    %943 = vmatprep.subr.bf16.mxu0 0
    %944 = vmatpush1.bf16.msra.mxu0 %v806
    %945 = vmatprep.subr.bf16.mxu0 0
    %946 = vmatpush1.bf16.msra.mxu0 %v809
    %947 = vmatprep.subr.bf16.mxu0 0
    %948 = vmatpush1.bf16.msra.mxu0 %v812
    %949 = vmatprep.subr.bf16.mxu0 0
    %950 = vmatpush1.bf16.msra.mxu0 %v815
    %951 = vmatprep.subr.bf16.mxu0 0
    %952 = vmatpush1.bf16.msra.mxu0 %v818
    %953 = vmatprep.subr.bf16.mxu0 0
    %954 = vmatpush1.bf16.msra.mxu0 %v821
    %955 = vmatprep.subr.bf16.mxu0 0
    %956 = vmatpush1.bf16.msra.mxu0 %v824
    %957 = vmatprep.subr.bf16.mxu0 0
    %958 = vmatpush1.bf16.msra.mxu0 %v827
    %959 = vmatprep.subr.bf16.mxu0 0
    %960 = vmatpush1.bf16.msra.mxu0 %v830
    %961 = vmatprep.subr.bf16.mxu0 0
    %962 = vmatpush1.bf16.msra.mxu0 %v833
    %963 = vmatprep.subr.bf16.mxu0 0
    %964 = vmatpush1.bf16.msra.mxu0 %v836
    %965 = vmatprep.subr.bf16.mxu0 0
    %966 = vmatpush1.bf16.msra.mxu0 %v839
    %967 = vmatprep.subr.bf16.mxu0 0
    %968 = vmatpush1.bf16.msra.mxu0 %v842
    %969 = vmatprep.subr.bf16.mxu0 0
    %970 = vmatpush1.bf16.msra.mxu0 %v845
    %971 = vmatprep.subr.bf16.mxu0 0
    %972 = vmatpush1.bf16.msra.mxu0 %v848
    %973 = vmatprep.subr.bf16.mxu0 0
    %974 = vmatpush1.bf16.msra.mxu0 %v851
    %975 = vmatprep.mubr.bf16.mxu0 %v562
    %976 = vmatmul.mubr.bf16.gmra.mrb[0].mxu0 %v561
    %v977 = vpop.f32.mrb[0].mxu0
    %v978 = vadd.f32 %v640, %v977
    %v979 = vpop.f32.mrb[0].mxu0
    %v980 = vpop.f32.mrb[0].mxu0
    %v981 = vadd.f32 %v640, %v980
    %v982 = vpop.f32.mrb[0].mxu0
    %983 = vdwg.mxu0
    %984 = vst [vmem:[#allocation8] sm:$0xff] %v935
    %985 = vst [vmem:[#allocation8 + $0x8] sm:$0xff] %v937
    %986 = vst [vmem:[#allocation8 + $0x10] sm:$0xff] %v978
    %987 = vst [vmem:[#allocation8 + $0x18] sm:$0xff] %v939
    %988 = vst [vmem:[#allocation8 + $0x20] sm:$0xff] %v941
    %989 = vst [vmem:[#allocation8 + $0x28] sm:$0xff] %v981
    // Predicated region
    $region34: #{tpu_custom_call.1} parent=1 // pred_check
      _
    $region35: #{tpu_custom_call.1} parent=1 // pred_check_branch
      %991 = sbr.rel (0) target = $region37
    $region36: #{tpu_custom_call.1} parent=1 // pred_region
      %s993 = ssub.s32 768, 768
      %994 = vsyncadd [#allocation4], %s993
      %s995 = sshll.u32 [#allocation8], 4
      %s996 = int_to_ptr.vmem [resolvable:$true] %s995
      %1001 = dma.vmem_to_hbm [thread:$0]  %s996, 768, %s5, [#allocation4], 384, 384, 24
    $region37: #{tpu_custom_call.1} parent=1 // pred_fallthru
      _
    // Predicated region
    $region38: #{tpu_custom_call.1} parent=1 // pred_check
      _
    $region39: #{tpu_custom_call.1} parent=1 // pred_check_branch
      %1003 = sbr.rel (0) target = $region41
    $region40: #{tpu_custom_call.1} parent=1 // pred_region
      %1004 = dma.done [#allocation4], 768
    $region41: #{tpu_custom_call.1} parent=1 // pred_fallthru
      _
    %1005 = vsyncpa [#allocation3], 1
    %1006 = vsyncpa [#allocation6], 1
    %1007 = vsyncpa [#allocation4], 1

</llo_original>
